<compile_context>
chip_gen: v7x
topology: tpu7x:2x2x1
jax: 0.10.0
libtpu: 0.0.40
codegen_flags: <defaults>
</compile_context>

<pallas_src>
import functools

import jax
import jax.numpy as jnp
from jax import lax
from jax.experimental import pallas as pl
from jax.experimental.pallas import tpu as pltpu


BN_EPS = 1e-5
_FIXED_VMEM_OVERHEAD = 4 * 1024 * 1024   # weights, scratch, compiler headroom


def _lane_pad(n):
    return ((n + 127) // 128) * 128


def _pick_vmem_limit_bytes():
    """Scoped-VMEM limit sized per chip generation (v5e/v6e: 128 MiB physical,
    v7x: 64 MiB per TensorCore). Falls back to the v7x-safe value."""
    cap = None
    try:
        info = pltpu.get_tpu_info()
        cap = getattr(info, "vmem_capacity_bytes", None)
    except Exception:
        cap = None
    if cap is None:
        cap = 64 * 1024 * 1024
    if cap >= 100 * 1024 * 1024:          # v5e / v6e
        return 96 * 1024 * 1024
    return 48 * 1024 * 1024               # v7x


def _fold_bn_into_linear2(mean, var, gamma, beta, w2, b2):
    """Fold train-mode BatchNorm into Linear2: returns (w2', b2') with
    y = h_relu @ w2' + b2'  ==  ((h_relu - mean)/sqrt(var+eps)*gamma + beta) @ w2 + b2.
    Uses a diag(scale) matmul to place the per-feature scale along the sublane
    axis of w2 without any transpose/reshape relayout."""
    gamma = gamma.astype(jnp.float32)
    beta = beta.astype(jnp.float32)
    w2 = w2.astype(jnp.float32)
    b2 = b2.astype(jnp.float32)
    scale = gamma * lax.rsqrt(var + BN_EPS)          # (1, H)
    shift = beta - mean * scale                      # (1, H)
    H = w2.shape[0]
    r = lax.broadcasted_iota(jnp.int32, (H, H), 0)
    c = lax.broadcasted_iota(jnp.int32, (H, H), 1)
    diag = jnp.where(r == c, jnp.broadcast_to(scale, (H, H)), 0.0)
    w2f = jnp.dot(diag, w2, preferred_element_type=jnp.float32)      # (H, OUT)
    b2f = jnp.dot(shift, w2, preferred_element_type=jnp.float32) + b2  # (1, OUT)
    return w2f, b2f


def _linear1_relu(x_ref, w1_ref, b1_ref):
    x = x_ref[...]                                                    # (TB, F)
    h = jnp.dot(x, w1_ref[...], preferred_element_type=jnp.float32)  # (TB, H) f32
    return jnp.maximum(h + b1_ref[...].astype(jnp.float32), 0.0)


# --------------------------------------------------------------------------
# Single-pass kernel: whole batch resident in VMEM. x read once, exact
# (centered, two-sweep) batch variance, BN folded into Linear2.
# --------------------------------------------------------------------------
def _single_pass_kernel(x_ref, w1_ref, b1_ref, gamma_ref, beta_ref,
                        w2_ref, b2_ref, o_ref):
    h = _linear1_relu(x_ref, w1_ref, b1_ref)                  # (B, H) f32
    inv_n = jnp.float32(1.0 / h.shape[0])
    mean = jnp.sum(h, axis=0, keepdims=True) * inv_n
    centered = h - mean
    var = jnp.sum(centered * centered, axis=0, keepdims=True) * inv_n
    w2f, b2f = _fold_bn_into_linear2(mean, var, gamma_ref[...], beta_ref[...],
                                     w2_ref[...], b2_ref[...])
    y = jnp.dot(h, w2f, preferred_element_type=jnp.float32) + b2f
    o_ref[...] = y.astype(o_ref.dtype)


# --------------------------------------------------------------------------
# Two-pass streaming kernel: grid=(2, n_tiles).  Pass 0: global stats
# (masked for the ragged last tile).  Pass 1: recompute cheap Linear1+ReLU and
# apply the BN-folded Linear2.  No output writes during pass 0.
# --------------------------------------------------------------------------
def _two_pass_kernel(x_ref, w1_ref, b1_ref, gamma_ref, beta_ref,
                     w2_ref, b2_ref, o_ref,
                     sum_ref, sumsq_ref, w2f_ref, b2f_ref, *, true_b, tb):
    p = pl.program_id(0)          # 0: global-stats pass, 1: apply pass
    i = pl.program_id(1)          # batch tile index
    n_tiles = pl.num_programs(1)

    h = _linear1_relu(x_ref, w1_ref, b1_ref)                  # (TB, H) f32

    @pl.when(p == 0)
    def _stats_pass():
        @pl.when(i == 0)
        def _init():
            sum_ref[...] = jnp.zeros_like(sum_ref)
            sumsq_ref[...] = jnp.zeros_like(sumsq_ref)

        # Mask batch rows beyond true_b (ragged last tile) out of the stats.
        row = lax.broadcasted_iota(jnp.int32, h.shape, 0) + i * tb
        hm = jnp.where(row < true_b, h, 0.0)
        sum_ref[...] += jnp.sum(hm, axis=0, keepdims=True)
        sumsq_ref[...] += jnp.sum(hm * hm, axis=0, keepdims=True)

        @pl.when(i == n_tiles - 1)
        def _finalize():
            inv_n = jnp.float32(1.0 / true_b)
            mean = sum_ref[...] * inv_n
            # Streaming (E[h^2] - mean^2) variance; clamp against cancellation.
            var = jnp.maximum(sumsq_ref[...] * inv_n - mean * mean, 0.0)
            w2f, b2f = _fold_bn_into_linear2(mean, var, gamma_ref[...],
                                             beta_ref[...], w2_ref[...],
                                             b2_ref[...])
            w2f_ref[...] = w2f
            b2f_ref[...] = b2f

    @pl.when(p == 1)
    def _apply_pass():
        y = jnp.dot(h, w2f_ref[...], preferred_element_type=jnp.float32)
        o_ref[...] = (y + b2f_ref[...]).astype(o_ref.dtype)


# --------------------------------------------------------------------------
# Wrapper
# --------------------------------------------------------------------------
def _single_pass_call(x, w1, b1, gamma, beta, w2, b2, vmem_limit):
    B, F = x.shape
    H = w1.shape[1]
    OUT = w2.shape[1]
    itemsize = jnp.dtype(x.dtype).itemsize
    w_bytes = 4 * (F * H + 3 * H + H * OUT + OUT)
    cost = pl.CostEstimate(
        flops=2 * B * F * H + 2 * B * H * OUT + 6 * B * H,
        transcendentals=H,
        bytes_accessed=B * F * itemsize + B * OUT * itemsize + w_bytes,
    )
    return pl.pallas_call(
        _single_pass_kernel,
        out_shape=jax.ShapeDtypeStruct((B, OUT), x.dtype),
        grid=(1,),
        in_specs=[
            pl.BlockSpec((B, F), lambda i: (0, 0)),
            pl.BlockSpec((F, H), lambda i: (0, 0)),
            pl.BlockSpec((1, H), lambda i: (0, 0)),
            pl.BlockSpec((1, H), lambda i: (0, 0)),
            pl.BlockSpec((1, H), lambda i: (0, 0)),
            pl.BlockSpec((H, OUT), lambda i: (0, 0)),
            pl.BlockSpec((1, OUT), lambda i: (0, 0)),
        ],
        out_specs=pl.BlockSpec((B, OUT), lambda i: (0, 0)),
        compiler_params=pltpu.CompilerParams(
            dimension_semantics=("arbitrary",),
            vmem_limit_bytes=vmem_limit,
        ),
        cost_estimate=cost,
    )(x, w1, b1, gamma, beta, w2, b2)


def label_perturbation(x, w1, b1, gamma, beta, w2, b2, *, tb=None):
    """x: (B, F); w1: (F, H); b1: (1, H); gamma/beta: (1, H);
    w2: (H, OUT); b2: (1, OUT).  Returns (B, OUT)."""
    B, F = x.shape
    H = w1.shape[1]
    OUT = w2.shape[1]
    itemsize = jnp.dtype(x.dtype).itemsize

    vmem_limit = _pick_vmem_limit_bytes()
    budget = vmem_limit - _FIXED_VMEM_OVERHEAD

    # Real per-row VMEM cost: x / out blocks are lane-padded to 128 and
    # double-buffered; the single-pass path also keeps the f32 hidden
    # activation (plus one temp) resident.
    x_row = _lane_pad(F) * itemsize
    out_row = _lane_pad(OUT) * itemsize
    h_row = _lane_pad(H) * 4
    single_per_row = 2 * x_row + 2 * out_row + 2 * h_row
    stream_per_row = 2 * x_row + 2 * out_row

    single_cap = max(8, budget // single_per_row)
    auto_tb = max(8, (budget // stream_per_row) // 8 * 8)

    if tb is None:
        if B <= single_cap:
            return _single_pass_call(x, w1, b1, gamma, beta, w2, b2, vmem_limit)
        tb = auto_tb
    if tb >= B:
        return _single_pass_call(x, w1, b1, gamma, beta, w2, b2, vmem_limit)

    tb = max(8, (tb // 8) * 8)              # keep (8, 128) tiling constraint happy
    n_tiles = pl.cdiv(B, tb)                # >= 2 here; ragged last tile is masked

    kernel = functools.partial(_two_pass_kernel, true_b=B, tb=tb)

    w_bytes = 4 * (F * H + 3 * H + H * OUT + OUT)
    cost = pl.CostEstimate(
        flops=4 * B * F * H + 2 * B * H * OUT,        # Linear1 run in both passes
        transcendentals=H,
        bytes_accessed=2 * B * F * itemsize + B * OUT * itemsize + w_bytes,
    )

    grid_spec = pltpu.PrefetchScalarGridSpec(
        num_scalar_prefetch=0,
        grid=(2, n_tiles),
        in_specs=[
            pl.BlockSpec((tb, F), lambda p, i: (i, 0)),      # x: tiled over batch
            pl.BlockSpec((F, H), lambda p, i: (0, 0)),       # w1: resident
            pl.BlockSpec((1, H), lambda p, i: (0, 0)),       # b1
            pl.BlockSpec((1, H), lambda p, i: (0, 0)),       # gamma
            pl.BlockSpec((1, H), lambda p, i: (0, 0)),       # beta
            pl.BlockSpec((H, OUT), lambda p, i: (0, 0)),     # w2
            pl.BlockSpec((1, OUT), lambda p, i: (0, 0)),     # b2
        ],
        # Pass 0 (p=0) keeps revisiting output block 0 -> no HBM writeback and
        # no in-kernel zero fill; pass 1 writes each block exactly once.
        out_specs=pl.BlockSpec((tb, OUT), lambda p, i: (p * i, 0)),
        scratch_shapes=[
            pltpu.VMEM((1, H), jnp.float32),                 # sum
            pltpu.VMEM((1, H), jnp.float32),                 # sum of squares
            pltpu.VMEM((H, OUT), jnp.float32),               # BN-folded w2'
            pltpu.VMEM((1, OUT), jnp.float32),               # BN-folded b2'
        ],
    )

    return pl.pallas_call(
        kernel,
        out_shape=jax.ShapeDtypeStruct((B, OUT), x.dtype),
        grid_spec=grid_spec,
        compiler_params=pltpu.CompilerParams(
            # Batch tiles are coupled through the shared stats scratch, so both
            # axes stay sequential ("arbitrary").
            dimension_semantics=("arbitrary", "arbitrary"),
            vmem_limit_bytes=vmem_limit,
        ),
        cost_estimate=cost,
    )(x, w1, b1, gamma, beta, w2, b2)


def init_params(key, in_features, out_features):
    """Deterministic init mimicking PyTorch defaults (uniform +/- 1/sqrt(fan_in))."""
    hidden = in_features // 2
    k1, k2, k3, k4 = jax.random.split(key, 4)
    bound1 = 1.0 / jnp.sqrt(jnp.float32(in_features))
    bound2 = 1.0 / jnp.sqrt(jnp.float32(hidden))
    # Stored as (in, out) = W^T relative to PyTorch's (out, in).
    w1 = jax.random.uniform(k1, (in_features, hidden), jnp.float32, -bound1, bound1)
    b1 = jax.random.uniform(k2, (1, hidden), jnp.float32, -bound1, bound1)
    gamma = jnp.ones((1, hidden), jnp.float32)   # BatchNorm1d weight
    beta = jnp.zeros((1, hidden), jnp.float32)   # BatchNorm1d bias
    w2 = jax.random.uniform(k3, (hidden, out_features), jnp.float32, -bound2, bound2)
    b2 = jax.random.uniform(k4, (1, out_features), jnp.float32, -bound2, bound2)
    return w1, b1, gamma, beta, w2, b2


def reference(x, w1, b1, gamma, beta, w2, b2):
    h = jnp.maximum(x @ w1 + b1, 0.0)
    mean = jnp.mean(h, axis=0, keepdims=True)
    var = jnp.mean((h - mean) ** 2, axis=0, keepdims=True)
    h = (h - mean) / jnp.sqrt(var + BN_EPS) * gamma + beta
    return h @ w2 + b2


if __name__ == "__main__":
    key = jax.random.PRNGKey(0)
    kx1, kx2, kp = jax.random.split(key, 3)

    in_features, out_features = 32, 8
    params = init_params(kp, in_features, out_features)

    # Case 1: auto dispatch -> single-pass fused kernel (whole batch resident,
    # x read from HBM exactly once, exact centered variance).
    x1 = jax.random.normal(kx1, (200, in_features), jnp.float32)
    y1 = jax.block_until_ready(label_perturbation(x1, *params))
    y1_ref = reference(x1, *params)
    assert y1.shape == (200, out_features)
    assert jnp.allclose(y1, y1_ref, atol=1e-3, rtol=1e-3), "mismatch (single-pass)"

    # Case 2: forced tiny tile -> two-pass streaming kernel with a ragged last
    # tile (200 = 3*64 + 8): exercises global-stat accumulation, in-kernel
    # masking (no wrapper pad copy), and the no-write pass-0 output path.
    y1b = jax.block_until_ready(label_perturbation(x1, *params, tb=64))
    assert y1b.shape == (200, out_features)
    assert jnp.allclose(y1b, y1_ref, atol=1e-3, rtol=1e-3), "mismatch (two-pass)"

    # Case 3: tiny batch, single full block.
    x2 = jax.random.normal(kx2, (8, in_features), jnp.float32)
    y2 = jax.block_until_ready(label_perturbation(x2, *params))
    y2_ref = reference(x2, *params)
    assert y2.shape == (8, out_features)
    assert jnp.allclose(y2, y2_ref, atol=1e-3, rtol=1e-3), "mismatch (small batch)"

    print("KERNEL_OK")
</pallas_src>

<mosaic_0001>
module attributes {stable_mosaic.version = 11 : i64} {
  func.func @_single_pass_kernel(%arg0: i32, %arg1: memref<200x32xf32, #tpu.memory_space<vmem>>, %arg2: memref<32x16xf32, #tpu.memory_space<vmem>>, %arg3: memref<1x16xf32, #tpu.memory_space<vmem>>, %arg4: memref<1x16xf32, #tpu.memory_space<vmem>>, %arg5: memref<1x16xf32, #tpu.memory_space<vmem>>, %arg6: memref<16x8xf32, #tpu.memory_space<vmem>>, %arg7: memref<1x8xf32, #tpu.memory_space<vmem>>, %arg8: memref<200x8xf32, #tpu.memory_space<vmem>>) attributes {dimension_semantics = [#tpu.dimension_semantics<arbitrary>], iteration_bounds = array<i64: 1>, scalar_prefetch = 0 : i64, scratch_operands = 0 : i64, tpu.core_type = #tpu.core_type<tc>, window_params = [{pipeline_mode = #tpu.pipeline_mode<synchronous>, transform_indices = @transform_0, window_bounds = array<i64: 200, 32>}, {pipeline_mode = #tpu.pipeline_mode<synchronous>, transform_indices = @transform_1, window_bounds = array<i64: 32, 16>}, {pipeline_mode = #tpu.pipeline_mode<synchronous>, transform_indices = @transform_2, window_bounds = array<i64: 1, 16>}, {pipeline_mode = #tpu.pipeline_mode<synchronous>, transform_indices = @transform_3, window_bounds = array<i64: 1, 16>}, {pipeline_mode = #tpu.pipeline_mode<synchronous>, transform_indices = @transform_4, window_bounds = array<i64: 1, 16>}, {pipeline_mode = #tpu.pipeline_mode<synchronous>, transform_indices = @transform_5, window_bounds = array<i64: 16, 8>}, {pipeline_mode = #tpu.pipeline_mode<synchronous>, transform_indices = @transform_6, window_bounds = array<i64: 1, 8>}, {pipeline_mode = #tpu.pipeline_mode<synchronous>, transform_indices = @transform_7, window_bounds = array<i64: 200, 8>}]} {
    %c0 = arith.constant 0 : index
    %c0_0 = arith.constant 0 : index
    %0 = vector.load %arg1[%c0, %c0_0] : memref<200x32xf32, #tpu.memory_space<vmem>>, vector<200x32xf32>
    %c0_1 = arith.constant 0 : index
    %c0_2 = arith.constant 0 : index
    %1 = vector.load %arg2[%c0_1, %c0_2] : memref<32x16xf32, #tpu.memory_space<vmem>>, vector<32x16xf32>
    %cst = arith.constant dense<0.000000e+00> : vector<200x16xf32>
    %2 = tpu.matmul %0, %1, %cst {dimension_numbers = #tpu.dot_dimension_numbers<[1], [0], [0], [1], [0, 0, 1, 1], [], []>} : vector<200x32xf32>, vector<32x16xf32>, vector<200x16xf32> -> vector<200x16xf32>
    %c0_3 = arith.constant 0 : index
    %c0_4 = arith.constant 0 : index
    %3 = vector.load %arg3[%c0_3, %c0_4] : memref<1x16xf32, #tpu.memory_space<vmem>>, vector<1x16xf32>
    %4 = vector.broadcast %3 : vector<1x16xf32> to vector<200x16xf32>
    %5 = arith.addf %2, %4 : vector<200x16xf32>
    %cst_5 = arith.constant 0.000000e+00 : f32
    %6 = vector.broadcast %cst_5 : f32 to vector<200x16xf32>
    %7 = arith.maximumf %5, %6 : vector<200x16xf32>
    %cst_6 = arith.constant dense<0.000000e+00> : vector<16xf32>
    %8 = vector.multi_reduction <add>, %7, %cst_6 [0] : vector<200x16xf32> to vector<16xf32>
    %9 = vector.shape_cast %8 : vector<16xf32> to vector<1x16xf32>
    %cst_7 = arith.constant 5.000000e-03 : f32
    %10 = vector.broadcast %cst_7 : f32 to vector<1x16xf32>
    %11 = arith.mulf %9, %10 : vector<1x16xf32>
    %12 = vector.broadcast %11 : vector<1x16xf32> to vector<200x16xf32>
    %13 = arith.subf %7, %12 : vector<200x16xf32>
    %14 = arith.mulf %13, %13 : vector<200x16xf32>
    %cst_8 = arith.constant dense<0.000000e+00> : vector<16xf32>
    %15 = vector.multi_reduction <add>, %14, %cst_8 [0] : vector<200x16xf32> to vector<16xf32>
    %16 = vector.shape_cast %15 : vector<16xf32> to vector<1x16xf32>
    %cst_9 = arith.constant 5.000000e-03 : f32
    %17 = vector.broadcast %cst_9 : f32 to vector<1x16xf32>
    %18 = arith.mulf %16, %17 : vector<1x16xf32>
    %c0_10 = arith.constant 0 : index
    %c0_11 = arith.constant 0 : index
    %19 = vector.load %arg4[%c0_10, %c0_11] : memref<1x16xf32, #tpu.memory_space<vmem>>, vector<1x16xf32>
    %c0_12 = arith.constant 0 : index
    %c0_13 = arith.constant 0 : index
    %20 = vector.load %arg5[%c0_12, %c0_13] : memref<1x16xf32, #tpu.memory_space<vmem>>, vector<1x16xf32>
    %c0_14 = arith.constant 0 : index
    %c0_15 = arith.constant 0 : index
    %21 = vector.load %arg6[%c0_14, %c0_15] : memref<16x8xf32, #tpu.memory_space<vmem>>, vector<16x8xf32>
    %c0_16 = arith.constant 0 : index
    %c0_17 = arith.constant 0 : index
    %22 = vector.load %arg7[%c0_16, %c0_17] : memref<1x8xf32, #tpu.memory_space<vmem>>, vector<1x8xf32>
    %cst_18 = arith.constant 9.99999974E-6 : f32
    %23 = vector.broadcast %cst_18 : f32 to vector<1x16xf32>
    %24 = arith.addf %18, %23 : vector<1x16xf32>
    %25 = math.rsqrt %24 : vector<1x16xf32>
    %26 = arith.mulf %19, %25 : vector<1x16xf32>
    %27 = arith.mulf %11, %26 : vector<1x16xf32>
    %28 = arith.subf %20, %27 : vector<1x16xf32>
    %29 = tpu.iota {dimensions = array<i32: 0>} : vector<16x16xi32>
    %30 = tpu.iota {dimensions = array<i32: 1>} : vector<16x16xi32>
    %31 = arith.cmpi eq, %29, %30 : vector<16x16xi32>
    %32 = vector.shape_cast %26 : vector<1x16xf32> to vector<1x16xf32>
    %33 = vector.broadcast %32 : vector<1x16xf32> to vector<16x16xf32>
    %cst_19 = arith.constant 0.000000e+00 : f32
    %34 = vector.broadcast %cst_19 : f32 to vector<16x16xf32>
    %35 = arith.select %31, %33, %34 : vector<16x16xi1>, vector<16x16xf32>
    %cst_20 = arith.constant dense<0.000000e+00> : vector<16x8xf32>
    %36 = tpu.matmul %35, %21, %cst_20 {dimension_numbers = #tpu.dot_dimension_numbers<[1], [0], [0], [1], [0, 0, 1, 1], [], []>} : vector<16x16xf32>, vector<16x8xf32>, vector<16x8xf32> -> vector<16x8xf32>
    %cst_21 = arith.constant dense<0.000000e+00> : vector<1x8xf32>
    %37 = tpu.matmul %28, %21, %cst_21 {dimension_numbers = #tpu.dot_dimension_numbers<[1], [0], [0], [1], [0, 0, 1, 1], [], []>} : vector<1x16xf32>, vector<16x8xf32>, vector<1x8xf32> -> vector<1x8xf32>
    %38 = arith.addf %37, %22 : vector<1x8xf32>
    %cst_22 = arith.constant dense<0.000000e+00> : vector<200x8xf32>
    %39 = tpu.matmul %7, %36, %cst_22 {dimension_numbers = #tpu.dot_dimension_numbers<[1], [0], [0], [1], [0, 0, 1, 1], [], []>} : vector<200x16xf32>, vector<16x8xf32>, vector<200x8xf32> -> vector<200x8xf32>
    %40 = vector.broadcast %38 : vector<1x8xf32> to vector<200x8xf32>
    %41 = arith.addf %39, %40 : vector<200x8xf32>
    %c0_23 = arith.constant 0 : index
    %c0_24 = arith.constant 0 : index
    %42 = vector.load %arg8[%c0_23, %c0_24] : memref<200x8xf32, #tpu.memory_space<vmem>>, vector<200x8xf32>
    tpu.vector_store %arg8[%c0_23, %c0_24], %41 {strides = array<i32>} : memref<200x8xf32, #tpu.memory_space<vmem>>, vector<200x8xf32>,
    return
  }
  func.func @transform_0(%arg0: i32) -> (i32, i32) {
    %c0_i32 = arith.constant 0 : i32
    %c0_i32_0 = arith.constant 0 : i32
    %c0_i32_1 = arith.constant 0 : i32
    return %c0_i32, %c0_i32_0 : i32, i32
  }
  func.func @transform_1(%arg0: i32) -> (i32, i32) {
    %c0_i32 = arith.constant 0 : i32
    %c0_i32_0 = arith.constant 0 : i32
    %c0_i32_1 = arith.constant 0 : i32
    return %c0_i32, %c0_i32_0 : i32, i32
  }
  func.func @transform_2(%arg0: i32) -> (i32, i32) {
    %c0_i32 = arith.constant 0 : i32
    %c0_i32_0 = arith.constant 0 : i32
    %c0_i32_1 = arith.constant 0 : i32
    return %c0_i32, %c0_i32_0 : i32, i32
  }
  func.func @transform_3(%arg0: i32) -> (i32, i32) {
    %c0_i32 = arith.constant 0 : i32
    %c0_i32_0 = arith.constant 0 : i32
    %c0_i32_1 = arith.constant 0 : i32
    return %c0_i32, %c0_i32_0 : i32, i32
  }
  func.func @transform_4(%arg0: i32) -> (i32, i32) {
    %c0_i32 = arith.constant 0 : i32
    %c0_i32_0 = arith.constant 0 : i32
    %c0_i32_1 = arith.constant 0 : i32
    return %c0_i32, %c0_i32_0 : i32, i32
  }
  func.func @transform_5(%arg0: i32) -> (i32, i32) {
    %c0_i32 = arith.constant 0 : i32
    %c0_i32_0 = arith.constant 0 : i32
    %c0_i32_1 = arith.constant 0 : i32
    return %c0_i32, %c0_i32_0 : i32, i32
  }
  func.func @transform_6(%arg0: i32) -> (i32, i32) {
    %c0_i32 = arith.constant 0 : i32
    %c0_i32_0 = arith.constant 0 : i32
    %c0_i32_1 = arith.constant 0 : i32
    return %c0_i32, %c0_i32_0 : i32, i32
  }
  func.func @transform_7(%arg0: i32) -> (i32, i32) {
    %c0_i32 = arith.constant 0 : i32
    %c0_i32_0 = arith.constant 0 : i32
    %c0_i32_1 = arith.constant 0 : i32
    return %c0_i32, %c0_i32_0 : i32, i32
  }
}

</mosaic_0001>

<llo_original>
// kernel: tpu_custom_call.1
$region0: #{tpu_custom_call.1}
  #allocation0 [shape = 'u32[]', space=smem, size = 0x4, offset = 0x4, fixed_abs, tag = 'smem constant byte address 0x4 - core index']
  #allocation1 [shape = 'u32[144,128]{1,0:T(1,128)}', space=vmem, size = 0x12000, scoped, tag = 'internal scratch']
  %s0 = inlined_call_operand.vmem [shape: f32[200,32], index: 0, kind: input, shape index: {}]
  %s1 = inlined_call_operand.vmem [shape: f32[32,16], index: 1, kind: input, shape index: {}]
  %s2 = inlined_call_operand.vmem [shape: f32[1,16], index: 2, kind: input, shape index: {}]
  %s3 = inlined_call_operand.vmem [shape: f32[1,16], index: 3, kind: input, shape index: {}]
  %s4 = inlined_call_operand.vmem [shape: f32[1,16], index: 4, kind: input, shape index: {}]
  %s5 = inlined_call_operand.vmem [shape: f32[16,8], index: 5, kind: input, shape index: {}]
  %s6 = inlined_call_operand.vmem [shape: f32[1,8], index: 6, kind: input, shape index: {}]
  %s7 = inlined_call_operand.vmem [shape: f32[200,8], index: 7, kind: output, shape index: {}]
  %s8 = sld [smem:[#allocation0]]
  $region38: #{tpu_custom_call.1} parent=0
    _
  %s10 = ssub.s32 1, %s8
  %s11 = scalar_select 0, %s10, %s8
  // Predicated region
  $region2: #{tpu_custom_call.1} parent=0 // pred_check
    _
  $region3: #{tpu_custom_call.1} parent=0 // pred_check_branch
    %13 = sbr.rel (0) target = $region5
  $region4: #{tpu_custom_call.1} parent=0 // pred_region
    _
  $region5: #{tpu_custom_call.1} parent=0 // pred_fallthru
    _
  // Predicated region
  $region6: #{tpu_custom_call.1} parent=0 // pred_check
    _
  $region7: #{tpu_custom_call.1} parent=0 // pred_check_branch
    %15 = sbr.rel (0) target = $region9
  $region8: #{tpu_custom_call.1} parent=0 // pred_region
    _
  $region9: #{tpu_custom_call.1} parent=0 // pred_fallthru
    _
  // Predicated region
  $region10: #{tpu_custom_call.1} parent=0 // pred_check
    _
  $region11: #{tpu_custom_call.1} parent=0 // pred_check_branch
    %17 = sbr.rel (0) target = $region13
  $region12: #{tpu_custom_call.1} parent=0 // pred_region
    _
  $region13: #{tpu_custom_call.1} parent=0 // pred_fallthru
    _
  // Predicated region
  $region14: #{tpu_custom_call.1} parent=0 // pred_check
    _
  $region15: #{tpu_custom_call.1} parent=0 // pred_check_branch
    %19 = sbr.rel (0) target = $region17
  $region16: #{tpu_custom_call.1} parent=0 // pred_region
    _
  $region17: #{tpu_custom_call.1} parent=0 // pred_fallthru
    _
  // Predicated region
  $region18: #{tpu_custom_call.1} parent=0 // pred_check
    _
  $region19: #{tpu_custom_call.1} parent=0 // pred_check_branch
    %21 = sbr.rel (0) target = $region21
  $region20: #{tpu_custom_call.1} parent=0 // pred_region
    _
  $region21: #{tpu_custom_call.1} parent=0 // pred_fallthru
    _
  // Predicated region
  $region22: #{tpu_custom_call.1} parent=0 // pred_check
    _
  $region23: #{tpu_custom_call.1} parent=0 // pred_check_branch
    %23 = sbr.rel (0) target = $region25
  $region24: #{tpu_custom_call.1} parent=0 // pred_region
    _
  $region25: #{tpu_custom_call.1} parent=0 // pred_fallthru
    _
  // Predicated region
  $region26: #{tpu_custom_call.1} parent=0 // pred_check
    _
  $region27: #{tpu_custom_call.1} parent=0 // pred_check_branch
    %25 = sbr.rel (0) target = $region29
  $region28: #{tpu_custom_call.1} parent=0 // pred_region
    _
  $region29: #{tpu_custom_call.1} parent=0 // pred_fallthru
    _
  %v26 = vld [vmem:[%s0] sm:$0xff]
  %v27 = vld [vmem:[%s0 + $0x8] sm:$0xff]
  %v28 = vld [vmem:[%s0 + $0x10] sm:$0xff]
  %v29 = vld [vmem:[%s0 + $0x18] sm:$0xff]
  %v30 = vld [vmem:[%s0 + $0x20] sm:$0xff]
  %v31 = vld [vmem:[%s0 + $0x28] sm:$0xff]
  %v32 = vld [vmem:[%s0 + $0x30] sm:$0xff]
  %v33 = vld [vmem:[%s0 + $0x38] sm:$0xff]
  %v34 = vld [vmem:[%s0 + $0x40] sm:$0xff]
  %v35 = vld [vmem:[%s0 + $0x48] sm:$0xff]
  %v36 = vld [vmem:[%s0 + $0x50] sm:$0xff]
  %v37 = vld [vmem:[%s0 + $0x58] sm:$0xff]
  %v38 = vld [vmem:[%s0 + $0x60] sm:$0xff]
  %v39 = vld [vmem:[%s0 + $0x68] sm:$0xff]
  %v40 = vld [vmem:[%s0 + $0x70] sm:$0xff]
  %v41 = vld [vmem:[%s0 + $0x78] sm:$0xff]
  %v42 = vld [vmem:[%s0 + $0x80] sm:$0xff]
  %v43 = vld [vmem:[%s0 + $0x88] sm:$0xff]
  %v44 = vld [vmem:[%s0 + $0x90] sm:$0xff]
  %v45 = vld [vmem:[%s0 + $0x98] sm:$0xff]
  %v46 = vld [vmem:[%s0 + $0xa0] sm:$0xff]
  %v47 = vld [vmem:[%s0 + $0xa8] sm:$0xff]
  %v48 = vld [vmem:[%s0 + $0xb0] sm:$0xff]
  %v49 = vld [vmem:[%s0 + $0xb8] sm:$0xff]
  %v50 = vld [vmem:[%s0 + $0xc0] sm:$0xff]
  %v51 = vld [vmem:[%s1] sm:$0xff]
  %v52 = vld [vmem:[%s1 + $0x8] sm:$0xff]
  %v53 = vld [vmem:[%s1 + $0x10] sm:$0xff]
  %v54 = vld [vmem:[%s1 + $0x18] sm:$0xff]
  %v55 = vld [vmem:[%s2] sm:$0x1]
  %v57 = vlaneseq
  %v58 = vshrl.u32 %v57, 7
  %v59 = vsub.s32 0, %v58
  %v60 = vrot.slane %v55, %v59
  %vm62 = vcmask 261120
  %v64 = vsel %vm62, %v26, 0
  %v67 = vsel %vm62, %v27, 0
  %v70 = vsel %vm62, %v28, 0
  %v73 = vsel %vm62, %v29, 0
  %v76 = vsel %vm62, %v30, 0
  %v79 = vsel %vm62, %v31, 0
  %v82 = vsel %vm62, %v32, 0
  %v85 = vsel %vm62, %v33, 0
  %v88 = vsel %vm62, %v34, 0
  %v91 = vsel %vm62, %v35, 0
  %v94 = vsel %vm62, %v36, 0
  %v97 = vsel %vm62, %v37, 0
  %v100 = vsel %vm62, %v38, 0
  %v103 = vsel %vm62, %v39, 0
  %v106 = vsel %vm62, %v40, 0
  %v109 = vsel %vm62, %v41, 0
  %v112 = vsel %vm62, %v42, 0
  %v115 = vsel %vm62, %v43, 0
  %v118 = vsel %vm62, %v44, 0
  %v121 = vsel %vm62, %v45, 0
  %v124 = vsel %vm62, %v46, 0
  %v127 = vsel %vm62, %v47, 0
  %v130 = vsel %vm62, %v48, 0
  %v133 = vsel %vm62, %v49, 0
  %v136 = vsel %vm62, %v50, 0
  %138 = vmatprep.subr.mxu0 0.0
  %139 = vmatpush1.msra.mxu0 %v51
  %140 = vmatprep.subr.mxu0 0.0
  %141 = vmatpush1.msra.mxu0 %v52
  %142 = vmatprep.subr.mxu0 0.0
  %143 = vmatpush1.msra.mxu0 %v53
  %144 = vmatprep.subr.mxu0 0.0
  %145 = vmatpush1.msra.mxu0 %v54
  %146 = vmatprep.subr.mxu0 0.0
  %147 = vmatpush1.msra.mxu0 0.0
  %148 = vmatprep.subr.mxu0 0.0
  %149 = vmatpush1.msra.mxu0 0.0
  %150 = vmatprep.subr.mxu0 0.0
  %151 = vmatpush1.msra.mxu0 0.0
  %152 = vmatprep.subr.mxu0 0.0
  %153 = vmatpush1.msra.mxu0 0.0
  %154 = vmatprep.subr.mxu0 0.0
  %155 = vmatpush1.msra.mxu0 0.0
  %156 = vmatprep.subr.mxu0 0.0
  %157 = vmatpush1.msra.mxu0 0.0
  %158 = vmatprep.subr.mxu0 0.0
  %159 = vmatpush1.msra.mxu0 0.0
  %160 = vmatprep.subr.mxu0 0.0
  %161 = vmatpush1.msra.mxu0 0.0
  %162 = vmatprep.subr.mxu0 0.0
  %163 = vmatpush1.msra.mxu0 0.0
  %164 = vmatprep.subr.mxu0 0.0
  %165 = vmatpush1.msra.mxu0 0.0
  %166 = vmatprep.subr.mxu0 0.0
  %167 = vmatpush1.msra.mxu0 0.0
  %168 = vmatprep.subr.mxu0 0.0
  %169 = vmatpush1.msra.mxu0 0.0
  %170 = vmatprep.subr.mxu0 0.0
  %171 = vmatpush1.msra.mxu0 0.0
  %172 = vmatprep.subr.mxu0 0.0
  %173 = vmatpush1.msra.mxu0 0.0
  %174 = vmatprep.subr.mxu0 0.0
  %175 = vmatpush1.msra.mxu0 0.0
  %176 = vmatprep.subr.mxu0 0.0
  %177 = vmatpush1.msra.mxu0 0.0
  %178 = vmatprep.subr.mxu0 0.0
  %179 = vmatpush1.msra.mxu0 0.0
  %180 = vmatprep.subr.mxu0 0.0
  %181 = vmatpush1.msra.mxu0 0.0
  %182 = vmatprep.subr.mxu0 0.0
  %183 = vmatpush1.msra.mxu0 0.0
  %184 = vmatprep.subr.mxu0 0.0
  %185 = vmatpush1.msra.mxu0 0.0
  %186 = vmatprep.subr.mxu0 0.0
  %187 = vmatpush1.msra.mxu0 0.0
  %188 = vmatprep.subr.mxu0 0.0
  %189 = vmatpush1.msra.mxu0 0.0
  %190 = vmatprep.subr.mxu0 0.0
  %191 = vmatpush1.msra.mxu0 0.0
  %192 = vmatprep.subr.mxu0 0.0
  %193 = vmatpush1.msra.mxu0 0.0
  %194 = vmatprep.subr.mxu0 0.0
  %195 = vmatpush1.msra.mxu0 0.0
  %196 = vmatprep.subr.mxu0 0.0
  %197 = vmatpush1.msra.mxu0 0.0
  %198 = vmatprep.subr.mxu0 0.0
  %199 = vmatpush1.msra.mxu0 0.0
  %200 = vmatprep.subr.mxu0 0.0
  %201 = vmatpush1.msra.mxu0 0.0
  %202 = vmatprep.mubr.f32.mxu0 0.0
  %203 = vmatmul.mubr.f32.gmra.mrb[0].mxu0 %v64
  %v204 = vpop.f32.mrb[0].mxu0
  %v205 = vadd.f32 %v60, %v204
  %v206 = vpop.f32.mrb[0].mxu0
  %207 = vmatprep.mubr.f32.mxu0 0.0
  %208 = vmatmul.mubr.f32.gmra.mrb[0].mxu0 %v67
  %v209 = vpop.f32.mrb[0].mxu0
  %v210 = vadd.f32 %v60, %v209
  %v211 = vpop.f32.mrb[0].mxu0
  %212 = vmatprep.mubr.f32.mxu0 0.0
  %213 = vmatmul.mubr.f32.gmra.mrb[0].mxu0 %v70
  %v214 = vpop.f32.mrb[0].mxu0
  %v215 = vadd.f32 %v60, %v214
  %v216 = vpop.f32.mrb[0].mxu0
  %217 = vmatprep.mubr.f32.mxu0 0.0
  %218 = vmatmul.mubr.f32.gmra.mrb[0].mxu0 %v73
  %v219 = vpop.f32.mrb[0].mxu0
  %v220 = vadd.f32 %v60, %v219
  %v221 = vpop.f32.mrb[0].mxu0
  %222 = vmatprep.mubr.f32.mxu0 0.0
  %223 = vmatmul.mubr.f32.gmra.mrb[0].mxu0 %v76
  %v224 = vpop.f32.mrb[0].mxu0
  %v225 = vadd.f32 %v60, %v224
  %v226 = vpop.f32.mrb[0].mxu0
  %227 = vmatprep.mubr.f32.mxu0 0.0
  %228 = vmatmul.mubr.f32.gmra.mrb[0].mxu0 %v79
  %v229 = vpop.f32.mrb[0].mxu0
  %v230 = vadd.f32 %v60, %v229
  %v231 = vpop.f32.mrb[0].mxu0
  %232 = vmatprep.mubr.f32.mxu0 0.0
  %233 = vmatmul.mubr.f32.gmra.mrb[0].mxu0 %v82
  %v234 = vpop.f32.mrb[0].mxu0
  %v235 = vadd.f32 %v60, %v234
  %v236 = vpop.f32.mrb[0].mxu0
  %237 = vmatprep.mubr.f32.mxu0 0.0
  %238 = vmatmul.mubr.f32.gmra.mrb[0].mxu0 %v85
  %v239 = vpop.f32.mrb[0].mxu0
  %v240 = vadd.f32 %v60, %v239
  %v241 = vpop.f32.mrb[0].mxu0
  %242 = vmatprep.mubr.f32.mxu0 0.0
  %243 = vmatmul.mubr.f32.gmra.mrb[0].mxu0 %v88
  %v244 = vpop.f32.mrb[0].mxu0
  %v245 = vadd.f32 %v60, %v244
  %v246 = vpop.f32.mrb[0].mxu0
  %247 = vmatprep.mubr.f32.mxu0 0.0
  %248 = vmatmul.mubr.f32.gmra.mrb[0].mxu0 %v91
  %v249 = vpop.f32.mrb[0].mxu0
  %v250 = vadd.f32 %v60, %v249
  %v251 = vpop.f32.mrb[0].mxu0
  %252 = vmatprep.mubr.f32.mxu0 0.0
  %253 = vmatmul.mubr.f32.gmra.mrb[0].mxu0 %v94
  %v254 = vpop.f32.mrb[0].mxu0
  %v255 = vadd.f32 %v60, %v254
  %v256 = vpop.f32.mrb[0].mxu0
  %257 = vmatprep.mubr.f32.mxu0 0.0
  %258 = vmatmul.mubr.f32.gmra.mrb[0].mxu0 %v97
  %v259 = vpop.f32.mrb[0].mxu0
  %v260 = vadd.f32 %v60, %v259
  %v261 = vpop.f32.mrb[0].mxu0
  %262 = vmatprep.mubr.f32.mxu0 0.0
  %263 = vmatmul.mubr.f32.gmra.mrb[0].mxu0 %v100
  %v264 = vpop.f32.mrb[0].mxu0
  %v265 = vadd.f32 %v60, %v264
  %v266 = vpop.f32.mrb[0].mxu0
  %267 = vmatprep.mubr.f32.mxu0 0.0
  %268 = vmatmul.mubr.f32.gmra.mrb[0].mxu0 %v103
  %v269 = vpop.f32.mrb[0].mxu0
  %v270 = vadd.f32 %v60, %v269
  %v271 = vpop.f32.mrb[0].mxu0
  %272 = vmatprep.mubr.f32.mxu0 0.0
  %273 = vmatmul.mubr.f32.gmra.mrb[0].mxu0 %v106
  %v274 = vpop.f32.mrb[0].mxu0
  %v275 = vadd.f32 %v60, %v274
  %v276 = vpop.f32.mrb[0].mxu0
  %277 = vmatprep.mubr.f32.mxu0 0.0
  %278 = vmatmul.mubr.f32.gmra.mrb[0].mxu0 %v109
  %v279 = vpop.f32.mrb[0].mxu0
  %v280 = vadd.f32 %v60, %v279
  %v281 = vpop.f32.mrb[0].mxu0
  %282 = vmatprep.mubr.f32.mxu0 0.0
  %283 = vmatmul.mubr.f32.gmra.mrb[0].mxu0 %v112
  %v284 = vpop.f32.mrb[0].mxu0
  %v285 = vadd.f32 %v60, %v284
  %v286 = vpop.f32.mrb[0].mxu0
  %287 = vmatprep.mubr.f32.mxu0 0.0
  %288 = vmatmul.mubr.f32.gmra.mrb[0].mxu0 %v115
  %v289 = vpop.f32.mrb[0].mxu0
  %v290 = vadd.f32 %v60, %v289
  %v291 = vpop.f32.mrb[0].mxu0
  %292 = vmatprep.mubr.f32.mxu0 0.0
  %293 = vmatmul.mubr.f32.gmra.mrb[0].mxu0 %v118
  %v294 = vpop.f32.mrb[0].mxu0
  %v295 = vadd.f32 %v60, %v294
  %v296 = vpop.f32.mrb[0].mxu0
  %297 = vmatprep.mubr.f32.mxu0 0.0
  %298 = vmatmul.mubr.f32.gmra.mrb[0].mxu0 %v121
  %v299 = vpop.f32.mrb[0].mxu0
  %v300 = vadd.f32 %v60, %v299
  %v301 = vpop.f32.mrb[0].mxu0
  %302 = vmatprep.mubr.f32.mxu0 0.0
  %303 = vmatmul.mubr.f32.gmra.mrb[0].mxu0 %v124
  %v304 = vpop.f32.mrb[0].mxu0
  %v305 = vadd.f32 %v60, %v304
  %v306 = vpop.f32.mrb[0].mxu0
  %307 = vmatprep.mubr.f32.mxu0 0.0
  %308 = vmatmul.mubr.f32.gmra.mrb[0].mxu0 %v127
  %v309 = vpop.f32.mrb[0].mxu0
  %v310 = vadd.f32 %v60, %v309
  %v311 = vpop.f32.mrb[0].mxu0
  %312 = vmatprep.mubr.f32.mxu0 0.0
  %313 = vmatmul.mubr.f32.gmra.mrb[0].mxu0 %v130
  %v314 = vpop.f32.mrb[0].mxu0
  %v315 = vadd.f32 %v60, %v314
  %v316 = vpop.f32.mrb[0].mxu0
  %317 = vmatprep.mubr.f32.mxu0 0.0
  %318 = vmatmul.mubr.f32.gmra.mrb[0].mxu0 %v133
  %v319 = vpop.f32.mrb[0].mxu0
  %v320 = vadd.f32 %v60, %v319
  %v321 = vpop.f32.mrb[0].mxu0
  %322 = vmatprep.mubr.f32.mxu0 0.0
  %323 = vmatmul.mubr.f32.gmra.mrb[0].mxu0 %v136
  %v324 = vpop.f32.mrb[0].mxu0
  %v325 = vadd.f32 %v60, %v324
  %v326 = vpop.f32.mrb[0].mxu0
  %327 = vdwg.mxu0
  %v328 = vmax.f32 %v205, 0.0
  %v329 = vmax.f32 %v210, 0.0
  %v330 = vmax.f32 %v215, 0.0
  %v331 = vmax.f32 %v220, 0.0
  %v332 = vmax.f32 %v225, 0.0
  %v333 = vmax.f32 %v230, 0.0
  %v334 = vmax.f32 %v235, 0.0
  %v335 = vmax.f32 %v240, 0.0
  %v336 = vmax.f32 %v245, 0.0
  %v337 = vmax.f32 %v250, 0.0
  %v338 = vmax.f32 %v255, 0.0
  %v339 = vmax.f32 %v260, 0.0
  %v340 = vmax.f32 %v265, 0.0
  %v341 = vmax.f32 %v270, 0.0
  %v342 = vmax.f32 %v275, 0.0
  %v343 = vmax.f32 %v280, 0.0
  %v344 = vmax.f32 %v285, 0.0
  %v345 = vmax.f32 %v290, 0.0
  %v346 = vmax.f32 %v295, 0.0
  %v347 = vmax.f32 %v300, 0.0
  %v348 = vmax.f32 %v305, 0.0
  %v349 = vmax.f32 %v310, 0.0
  %v350 = vmax.f32 %v315, 0.0
  %v351 = vmax.f32 %v320, 0.0
  %v352 = vmax.f32 %v325, 0.0
  %vm353 = vcmask 130048
  %v354 = vsel %vm353, %v328, 0.0
  %v355 = vsel %vm353, %v329, 0.0
  %v356 = vadd.f32 %v354, %v355
  %v357 = vsel %vm353, %v330, 0.0
  %v358 = vadd.f32 %v356, %v357
  %v359 = vsel %vm353, %v331, 0.0
  %v360 = vadd.f32 %v358, %v359
  %v361 = vsel %vm353, %v332, 0.0
  %v362 = vadd.f32 %v360, %v361
  %v363 = vsel %vm353, %v333, 0.0
  %v364 = vadd.f32 %v362, %v363
  %v365 = vsel %vm353, %v334, 0.0
  %v366 = vadd.f32 %v364, %v365
  %v367 = vsel %vm353, %v335, 0.0
  %v368 = vadd.f32 %v366, %v367
  %v369 = vsel %vm353, %v336, 0.0
  %v370 = vadd.f32 %v368, %v369
  %v371 = vsel %vm353, %v337, 0.0
  %v372 = vadd.f32 %v370, %v371
  %v373 = vsel %vm353, %v338, 0.0
  %v374 = vadd.f32 %v372, %v373
  %v375 = vsel %vm353, %v339, 0.0
  %v376 = vadd.f32 %v374, %v375
  %v377 = vsel %vm353, %v340, 0.0
  %v378 = vadd.f32 %v376, %v377
  %v379 = vsel %vm353, %v341, 0.0
  %v380 = vadd.f32 %v378, %v379
  %v381 = vsel %vm353, %v342, 0.0
  %v382 = vadd.f32 %v380, %v381
  %v383 = vsel %vm353, %v343, 0.0
  %v384 = vadd.f32 %v382, %v383
  %v385 = vsel %vm353, %v344, 0.0
  %v386 = vadd.f32 %v384, %v385
  %v387 = vsel %vm353, %v345, 0.0
  %v388 = vadd.f32 %v386, %v387
  %v389 = vsel %vm353, %v346, 0.0
  %v390 = vadd.f32 %v388, %v389
  %v391 = vsel %vm353, %v347, 0.0
  %v392 = vadd.f32 %v390, %v391
  %v393 = vsel %vm353, %v348, 0.0
  %v394 = vadd.f32 %v392, %v393
  %v395 = vsel %vm353, %v349, 0.0
  %v396 = vadd.f32 %v394, %v395
  %v397 = vsel %vm353, %v350, 0.0
  %v398 = vadd.f32 %v396, %v397
  %v399 = vsel %vm353, %v351, 0.0
  %v400 = vadd.f32 %v398, %v399
  %v401 = vsel %vm353, %v352, 0.0
  %v402 = vadd.f32 %v400, %v401
  %v403 = vrot.slane %v402, 4
  %v404 = vadd.f32 %v402, %v403
  %v405 = vrot.slane %v404, 2
  %v406 = vadd.f32 %v404, %v405
  %v407 = vrot.slane %v406, 1
  %v408 = vadd.f32 %v406, %v407
  %v409 = vmul.f32 %v408, 0.005
  %v410 = vsub.f32 %v328, %v409
  %v411 = vsub.f32 %v329, %v409
  %v412 = vsub.f32 %v330, %v409
  %v413 = vsub.f32 %v331, %v409
  %v414 = vsub.f32 %v332, %v409
  %v415 = vsub.f32 %v333, %v409
  %v416 = vsub.f32 %v334, %v409
  %v417 = vsub.f32 %v335, %v409
  %v418 = vsub.f32 %v336, %v409
  %v419 = vsub.f32 %v337, %v409
  %v420 = vsub.f32 %v338, %v409
  %v421 = vsub.f32 %v339, %v409
  %v422 = vsub.f32 %v340, %v409
  %v423 = vsub.f32 %v341, %v409
  %v424 = vsub.f32 %v342, %v409
  %v425 = vsub.f32 %v343, %v409
  %v426 = vsub.f32 %v344, %v409
  %v427 = vsub.f32 %v345, %v409
  %v428 = vsub.f32 %v346, %v409
  %v429 = vsub.f32 %v347, %v409
  %v430 = vsub.f32 %v348, %v409
  %v431 = vsub.f32 %v349, %v409
  %v432 = vsub.f32 %v350, %v409
  %v433 = vsub.f32 %v351, %v409
  %v434 = vsub.f32 %v352, %v409
  %v435 = vmul.f32 %v410, %v410
  %v436 = vmul.f32 %v411, %v411
  %v437 = vmul.f32 %v412, %v412
  %v438 = vmul.f32 %v413, %v413
  %v439 = vmul.f32 %v414, %v414
  %v440 = vmul.f32 %v415, %v415
  %v441 = vmul.f32 %v416, %v416
  %v442 = vmul.f32 %v417, %v417
  %v443 = vmul.f32 %v418, %v418
  %v444 = vmul.f32 %v419, %v419
  %v445 = vmul.f32 %v420, %v420
  %v446 = vmul.f32 %v421, %v421
  %v447 = vmul.f32 %v422, %v422
  %v448 = vmul.f32 %v423, %v423
  %v449 = vmul.f32 %v424, %v424
  %v450 = vmul.f32 %v425, %v425
  %v451 = vmul.f32 %v426, %v426
  %v452 = vmul.f32 %v427, %v427
  %v453 = vmul.f32 %v428, %v428
  %v454 = vmul.f32 %v429, %v429
  %v455 = vmul.f32 %v430, %v430
  %v456 = vmul.f32 %v431, %v431
  %v457 = vmul.f32 %v432, %v432
  %v458 = vmul.f32 %v433, %v433
  %v459 = vmul.f32 %v434, %v434
  %v460 = vsel %vm353, %v435, 0.0
  %v461 = vsel %vm353, %v436, 0.0
  %v462 = vadd.f32 %v460, %v461
  %v463 = vsel %vm353, %v437, 0.0
  %v464 = vadd.f32 %v462, %v463
  %v465 = vsel %vm353, %v438, 0.0
  %v466 = vadd.f32 %v464, %v465
  %v467 = vsel %vm353, %v439, 0.0
  %v468 = vadd.f32 %v466, %v467
  %v469 = vsel %vm353, %v440, 0.0
  %v470 = vadd.f32 %v468, %v469
  %v471 = vsel %vm353, %v441, 0.0
  %v472 = vadd.f32 %v470, %v471
  %v473 = vsel %vm353, %v442, 0.0
  %v474 = vadd.f32 %v472, %v473
  %v475 = vsel %vm353, %v443, 0.0
  %v476 = vadd.f32 %v474, %v475
  %v477 = vsel %vm353, %v444, 0.0
  %v478 = vadd.f32 %v476, %v477
  %v479 = vsel %vm353, %v445, 0.0
  %v480 = vadd.f32 %v478, %v479
  %v481 = vsel %vm353, %v446, 0.0
  %v482 = vadd.f32 %v480, %v481
  %v483 = vsel %vm353, %v447, 0.0
  %v484 = vadd.f32 %v482, %v483
  %v485 = vsel %vm353, %v448, 0.0
  %v486 = vadd.f32 %v484, %v485
  %v487 = vsel %vm353, %v449, 0.0
  %v488 = vadd.f32 %v486, %v487
  %v489 = vsel %vm353, %v450, 0.0
  %v490 = vadd.f32 %v488, %v489
  %v491 = vsel %vm353, %v451, 0.0
  %v492 = vadd.f32 %v490, %v491
  %v493 = vsel %vm353, %v452, 0.0
  %v494 = vadd.f32 %v492, %v493
  %v495 = vsel %vm353, %v453, 0.0
  %v496 = vadd.f32 %v494, %v495
  %v497 = vsel %vm353, %v454, 0.0
  %v498 = vadd.f32 %v496, %v497
  %v499 = vsel %vm353, %v455, 0.0
  %v500 = vadd.f32 %v498, %v499
  %v501 = vsel %vm353, %v456, 0.0
  %v502 = vadd.f32 %v500, %v501
  %v503 = vsel %vm353, %v457, 0.0
  %v504 = vadd.f32 %v502, %v503
  %v505 = vsel %vm353, %v458, 0.0
  %v506 = vadd.f32 %v504, %v505
  %v507 = vsel %vm353, %v459, 0.0
  %v508 = vadd.f32 %v506, %v507
  %v509 = vrot.slane %v508, 4
  %v510 = vadd.f32 %v508, %v509
  %v511 = vrot.slane %v510, 2
  %v512 = vadd.f32 %v510, %v511
  %v513 = vrot.slane %v512, 1
  %v514 = vadd.f32 %v512, %v513
  %v515 = vmul.f32 %v514, 0.005
  %v516 = vld [vmem:[%s3] sm:$0x1]
  %v517 = vld [vmem:[%s4] sm:$0x1]
  %v518 = vld [vmem:[%s5] sm:$0xff]
  %v519 = vld [vmem:[%s5 + $0x8] sm:$0xff]
  %v520 = vld [vmem:[%s6] sm:$0x1]
  %v521 = vadd.f32 %v515, 1e-05
  %v522 = vrsqrt.pop %v521
  %v523 = vmul.f32 %v516, %v522
  %v524 = vmul.f32 %v409, %v523
  %v525 = vsub.f32 %v517, %v524
  %v526 = vlaneseq
  %v527 = vshrl.u32 %v526, 7
  %v528 = vadd.s32 %v527, 8
  %v529 = vlaneseq
  %v530 = vand.u32 %v529, 127
  %vm531 = vcmp.eq.s32.totalorder %v527, %v530
  %vm532 = vcmp.eq.s32.totalorder %v528, %v530
  %v534 = vlaneseq
  %v535 = vshrl.u32 %v534, 7
  %v536 = vsub.s32 0, %v535
  %v537 = vrot.slane %v523, %v536
  %v539 = vsel %vm531, %v537, 0.0
  %v540 = vsel %vm532, %v537, 0.0
  %v542 = vsel %vm353, %v539, 0
  %v545 = vsel %vm353, %v540, 0
  %547 = vmatprep.subr.mxu0 0.0
  %548 = vmatpush1.msra.mxu0 %v518
  %549 = vmatprep.subr.mxu0 0.0
  %550 = vmatpush1.msra.mxu0 %v519
  %551 = vmatprep.subr.mxu0 0.0
  %552 = vmatpush1.msra.mxu0 0.0
  %553 = vmatprep.subr.mxu0 0.0
  %554 = vmatpush1.msra.mxu0 0.0
  %555 = vmatprep.subr.mxu0 0.0
  %556 = vmatpush1.msra.mxu0 0.0
  %557 = vmatprep.subr.mxu0 0.0
  %558 = vmatpush1.msra.mxu0 0.0
  %559 = vmatprep.subr.mxu0 0.0
  %560 = vmatpush1.msra.mxu0 0.0
  %561 = vmatprep.subr.mxu0 0.0
  %562 = vmatpush1.msra.mxu0 0.0
  %563 = vmatprep.subr.mxu0 0.0
  %564 = vmatpush1.msra.mxu0 0.0
  %565 = vmatprep.subr.mxu0 0.0
  %566 = vmatpush1.msra.mxu0 0.0
  %567 = vmatprep.subr.mxu0 0.0
  %568 = vmatpush1.msra.mxu0 0.0
  %569 = vmatprep.subr.mxu0 0.0
  %570 = vmatpush1.msra.mxu0 0.0
  %571 = vmatprep.subr.mxu0 0.0
  %572 = vmatpush1.msra.mxu0 0.0
  %573 = vmatprep.subr.mxu0 0.0
  %574 = vmatpush1.msra.mxu0 0.0
  %575 = vmatprep.subr.mxu0 0.0
  %576 = vmatpush1.msra.mxu0 0.0
  %577 = vmatprep.subr.mxu0 0.0
  %578 = vmatpush1.msra.mxu0 0.0
  %579 = vmatprep.subr.mxu0 0.0
  %580 = vmatpush1.msra.mxu0 0.0
  %581 = vmatprep.subr.mxu0 0.0
  %582 = vmatpush1.msra.mxu0 0.0
  %583 = vmatprep.subr.mxu0 0.0
  %584 = vmatpush1.msra.mxu0 0.0
  %585 = vmatprep.subr.mxu0 0.0
  %586 = vmatpush1.msra.mxu0 0.0
  %587 = vmatprep.subr.mxu0 0.0
  %588 = vmatpush1.msra.mxu0 0.0
  %589 = vmatprep.subr.mxu0 0.0
  %590 = vmatpush1.msra.mxu0 0.0
  %591 = vmatprep.subr.mxu0 0.0
  %592 = vmatpush1.msra.mxu0 0.0
  %593 = vmatprep.subr.mxu0 0.0
  %594 = vmatpush1.msra.mxu0 0.0
  %595 = vmatprep.subr.mxu0 0.0
  %596 = vmatpush1.msra.mxu0 0.0
  %597 = vmatprep.subr.mxu0 0.0
  %598 = vmatpush1.msra.mxu0 0.0
  %599 = vmatprep.subr.mxu0 0.0
  %600 = vmatpush1.msra.mxu0 0.0
  %601 = vmatprep.subr.mxu0 0.0
  %602 = vmatpush1.msra.mxu0 0.0
  %603 = vmatprep.subr.mxu0 0.0
  %604 = vmatpush1.msra.mxu0 0.0
  %605 = vmatprep.subr.mxu0 0.0
  %606 = vmatpush1.msra.mxu0 0.0
  %607 = vmatprep.subr.mxu0 0.0
  %608 = vmatpush1.msra.mxu0 0.0
  %609 = vmatprep.subr.mxu0 0.0
  %610 = vmatpush1.msra.mxu0 0.0
  %611 = vmatprep.mubr.f32.mxu0 0.0
  %612 = vmatmul.mubr.f32.gmra.mrb[0].mxu0 %v542
  %v613 = vpop.f32.mrb[0].mxu0
  %v614 = vadd.f32 0.0, %v613
  %v615 = vpop.f32.mrb[0].mxu0
  %616 = vmatprep.mubr.f32.mxu0 0.0
  %617 = vmatmul.mubr.f32.gmra.mrb[0].mxu0 %v545
  %v618 = vpop.f32.mrb[0].mxu0
  %v619 = vadd.f32 0.0, %v618
  %v620 = vpop.f32.mrb[0].mxu0
  %621 = vdwg.mxu0
  %v623 = vsel %vm353, %v525, 0
  %625 = vmatprep.subr.mxu0 0.0
  %626 = vmatpush1.msra.mxu0 %v518
  %627 = vmatprep.subr.mxu0 0.0
  %628 = vmatpush1.msra.mxu0 %v519
  %629 = vmatprep.subr.mxu0 0.0
  %630 = vmatpush1.msra.mxu0 0.0
  %631 = vmatprep.subr.mxu0 0.0
  %632 = vmatpush1.msra.mxu0 0.0
  %633 = vmatprep.subr.mxu0 0.0
  %634 = vmatpush1.msra.mxu0 0.0
  %635 = vmatprep.subr.mxu0 0.0
  %636 = vmatpush1.msra.mxu0 0.0
  %637 = vmatprep.subr.mxu0 0.0
  %638 = vmatpush1.msra.mxu0 0.0
  %639 = vmatprep.subr.mxu0 0.0
  %640 = vmatpush1.msra.mxu0 0.0
  %641 = vmatprep.subr.mxu0 0.0
  %642 = vmatpush1.msra.mxu0 0.0
  %643 = vmatprep.subr.mxu0 0.0
  %644 = vmatpush1.msra.mxu0 0.0
  %645 = vmatprep.subr.mxu0 0.0
  %646 = vmatpush1.msra.mxu0 0.0
  %647 = vmatprep.subr.mxu0 0.0
  %648 = vmatpush1.msra.mxu0 0.0
  %649 = vmatprep.subr.mxu0 0.0
  %650 = vmatpush1.msra.mxu0 0.0
  %651 = vmatprep.subr.mxu0 0.0
  %652 = vmatpush1.msra.mxu0 0.0
  %653 = vmatprep.subr.mxu0 0.0
  %654 = vmatpush1.msra.mxu0 0.0
  %655 = vmatprep.subr.mxu0 0.0
  %656 = vmatpush1.msra.mxu0 0.0
  %657 = vmatprep.subr.mxu0 0.0
  %658 = vmatpush1.msra.mxu0 0.0
  %659 = vmatprep.subr.mxu0 0.0
  %660 = vmatpush1.msra.mxu0 0.0
  %661 = vmatprep.subr.mxu0 0.0
  %662 = vmatpush1.msra.mxu0 0.0
  %663 = vmatprep.subr.mxu0 0.0
  %664 = vmatpush1.msra.mxu0 0.0
  %665 = vmatprep.subr.mxu0 0.0
  %666 = vmatpush1.msra.mxu0 0.0
  %667 = vmatprep.subr.mxu0 0.0
  %668 = vmatpush1.msra.mxu0 0.0
  %669 = vmatprep.subr.mxu0 0.0
  %670 = vmatpush1.msra.mxu0 0.0
  %671 = vmatprep.subr.mxu0 0.0
  %672 = vmatpush1.msra.mxu0 0.0
  %673 = vmatprep.subr.mxu0 0.0
  %674 = vmatpush1.msra.mxu0 0.0
  %675 = vmatprep.subr.mxu0 0.0
  %676 = vmatpush1.msra.mxu0 0.0
  %677 = vmatprep.subr.mxu0 0.0
  %678 = vmatpush1.msra.mxu0 0.0
  %679 = vmatprep.subr.mxu0 0.0
  %680 = vmatpush1.msra.mxu0 0.0
  %681 = vmatprep.subr.mxu0 0.0
  %682 = vmatpush1.msra.mxu0 0.0
  %683 = vmatprep.subr.mxu0 0.0
  %684 = vmatpush1.msra.mxu0 0.0
  %685 = vmatprep.subr.mxu0 0.0
  %686 = vmatpush1.msra.mxu0 0.0
  %687 = vmatprep.subr.mxu0 0.0
  %688 = vmatpush1.msra.mxu0 0.0
  %689 = vmatprep.mubr.f32.mxu0 0.0
  %690 = vmatmul.mubr.f32.gmra.mrb[0].mxu0 %v623
  %v691 = vpop.f32.mrb[0].mxu0
  %v692 = vadd.f32 %v520, %v691
  %v693 = vpop.f32.mrb[0].mxu0
  %694 = vdwg.mxu0
  %v695 = vlaneseq
  %v696 = vshrl.u32 %v695, 7
  %v697 = vsub.s32 0, %v696
  %v698 = vrot.slane %v692, %v697
  %v700 = vsel %vm353, %v328, 0
  %v703 = vsel %vm353, %v329, 0
  %v706 = vsel %vm353, %v330, 0
  %v709 = vsel %vm353, %v331, 0
  %v712 = vsel %vm353, %v332, 0
  %v715 = vsel %vm353, %v333, 0
  %v718 = vsel %vm353, %v334, 0
  %v721 = vsel %vm353, %v335, 0
  %v724 = vsel %vm353, %v336, 0
  %v727 = vsel %vm353, %v337, 0
  %v730 = vsel %vm353, %v338, 0
  %v733 = vsel %vm353, %v339, 0
  %v736 = vsel %vm353, %v340, 0
  %v739 = vsel %vm353, %v341, 0
  %v742 = vsel %vm353, %v342, 0
  %v745 = vsel %vm353, %v343, 0
  %v748 = vsel %vm353, %v344, 0
  %v751 = vsel %vm353, %v345, 0
  %v754 = vsel %vm353, %v346, 0
  %v757 = vsel %vm353, %v347, 0
  %v760 = vsel %vm353, %v348, 0
  %v763 = vsel %vm353, %v349, 0
  %v766 = vsel %vm353, %v350, 0
  %v769 = vsel %vm353, %v351, 0
  %v772 = vsel %vm353, %v352, 0
  %774 = vmatprep.subr.mxu0 0.0
  %775 = vmatpush1.msra.mxu0 %v614
  %776 = vmatprep.subr.mxu0 0.0
  %777 = vmatpush1.msra.mxu0 %v619
  %778 = vmatprep.subr.mxu0 0.0
  %779 = vmatpush1.msra.mxu0 0.0
  %780 = vmatprep.subr.mxu0 0.0
  %781 = vmatpush1.msra.mxu0 0.0
  %782 = vmatprep.subr.mxu0 0.0
  %783 = vmatpush1.msra.mxu0 0.0
  %784 = vmatprep.subr.mxu0 0.0
  %785 = vmatpush1.msra.mxu0 0.0
  %786 = vmatprep.subr.mxu0 0.0
  %787 = vmatpush1.msra.mxu0 0.0
  %788 = vmatprep.subr.mxu0 0.0
  %789 = vmatpush1.msra.mxu0 0.0
  %790 = vmatprep.subr.mxu0 0.0
  %791 = vmatpush1.msra.mxu0 0.0
  %792 = vmatprep.subr.mxu0 0.0
  %793 = vmatpush1.msra.mxu0 0.0
  %794 = vmatprep.subr.mxu0 0.0
  %795 = vmatpush1.msra.mxu0 0.0
  %796 = vmatprep.subr.mxu0 0.0
  %797 = vmatpush1.msra.mxu0 0.0
  %798 = vmatprep.subr.mxu0 0.0
  %799 = vmatpush1.msra.mxu0 0.0
  %800 = vmatprep.subr.mxu0 0.0
  %801 = vmatpush1.msra.mxu0 0.0
  %802 = vmatprep.subr.mxu0 0.0
  %803 = vmatpush1.msra.mxu0 0.0
  %804 = vmatprep.subr.mxu0 0.0
  %805 = vmatpush1.msra.mxu0 0.0
  %806 = vmatprep.subr.mxu0 0.0
  %807 = vmatpush1.msra.mxu0 0.0
  %808 = vmatprep.subr.mxu0 0.0
  %809 = vmatpush1.msra.mxu0 0.0
  %810 = vmatprep.subr.mxu0 0.0
  %811 = vmatpush1.msra.mxu0 0.0
  %812 = vmatprep.subr.mxu0 0.0
  %813 = vmatpush1.msra.mxu0 0.0
  %814 = vmatprep.subr.mxu0 0.0
  %815 = vmatpush1.msra.mxu0 0.0
  %816 = vmatprep.subr.mxu0 0.0
  %817 = vmatpush1.msra.mxu0 0.0
  %818 = vmatprep.subr.mxu0 0.0
  %819 = vmatpush1.msra.mxu0 0.0
  %820 = vmatprep.subr.mxu0 0.0
  %821 = vmatpush1.msra.mxu0 0.0
  %822 = vmatprep.subr.mxu0 0.0
  %823 = vmatpush1.msra.mxu0 0.0
  %824 = vmatprep.subr.mxu0 0.0
  %825 = vmatpush1.msra.mxu0 0.0
  %826 = vmatprep.subr.mxu0 0.0
  %827 = vmatpush1.msra.mxu0 0.0
  %828 = vmatprep.subr.mxu0 0.0
  %829 = vmatpush1.msra.mxu0 0.0
  %830 = vmatprep.subr.mxu0 0.0
  %831 = vmatpush1.msra.mxu0 0.0
  %832 = vmatprep.subr.mxu0 0.0
  %833 = vmatpush1.msra.mxu0 0.0
  %834 = vmatprep.subr.mxu0 0.0
  %835 = vmatpush1.msra.mxu0 0.0
  %836 = vmatprep.subr.mxu0 0.0
  %837 = vmatpush1.msra.mxu0 0.0
  %838 = vmatprep.mubr.f32.mxu0 0.0
  %839 = vmatmul.mubr.f32.gmra.mrb[0].mxu0 %v700
  %v840 = vpop.f32.mrb[0].mxu0
  %v841 = vadd.f32 %v698, %v840
  %v842 = vpop.f32.mrb[0].mxu0
  %843 = vmatprep.mubr.f32.mxu0 0.0
  %844 = vmatmul.mubr.f32.gmra.mrb[0].mxu0 %v703
  %v845 = vpop.f32.mrb[0].mxu0
  %v846 = vadd.f32 %v698, %v845
  %v847 = vpop.f32.mrb[0].mxu0
  %848 = vmatprep.mubr.f32.mxu0 0.0
  %849 = vmatmul.mubr.f32.gmra.mrb[0].mxu0 %v706
  %v850 = vpop.f32.mrb[0].mxu0
  %v851 = vadd.f32 %v698, %v850
  %v852 = vpop.f32.mrb[0].mxu0
  %853 = vmatprep.mubr.f32.mxu0 0.0
  %854 = vmatmul.mubr.f32.gmra.mrb[0].mxu0 %v709
  %v855 = vpop.f32.mrb[0].mxu0
  %v856 = vadd.f32 %v698, %v855
  %v857 = vpop.f32.mrb[0].mxu0
  %858 = vmatprep.mubr.f32.mxu0 0.0
  %859 = vmatmul.mubr.f32.gmra.mrb[0].mxu0 %v712
  %v860 = vpop.f32.mrb[0].mxu0
  %v861 = vadd.f32 %v698, %v860
  %v862 = vpop.f32.mrb[0].mxu0
  %863 = vmatprep.mubr.f32.mxu0 0.0
  %864 = vmatmul.mubr.f32.gmra.mrb[0].mxu0 %v715
  %v865 = vpop.f32.mrb[0].mxu0
  %v866 = vadd.f32 %v698, %v865
  %v867 = vpop.f32.mrb[0].mxu0
  %868 = vmatprep.mubr.f32.mxu0 0.0
  %869 = vmatmul.mubr.f32.gmra.mrb[0].mxu0 %v718
  %v870 = vpop.f32.mrb[0].mxu0
  %v871 = vadd.f32 %v698, %v870
  %v872 = vpop.f32.mrb[0].mxu0
  %873 = vmatprep.mubr.f32.mxu0 0.0
  %874 = vmatmul.mubr.f32.gmra.mrb[0].mxu0 %v721
  %v875 = vpop.f32.mrb[0].mxu0
  %v876 = vadd.f32 %v698, %v875
  %v877 = vpop.f32.mrb[0].mxu0
  %878 = vmatprep.mubr.f32.mxu0 0.0
  %879 = vmatmul.mubr.f32.gmra.mrb[0].mxu0 %v724
  %v880 = vpop.f32.mrb[0].mxu0
  %v881 = vadd.f32 %v698, %v880
  %v882 = vpop.f32.mrb[0].mxu0
  %883 = vmatprep.mubr.f32.mxu0 0.0
  %884 = vmatmul.mubr.f32.gmra.mrb[0].mxu0 %v727
  %v885 = vpop.f32.mrb[0].mxu0
  %v886 = vadd.f32 %v698, %v885
  %v887 = vpop.f32.mrb[0].mxu0
  %888 = vmatprep.mubr.f32.mxu0 0.0
  %889 = vmatmul.mubr.f32.gmra.mrb[0].mxu0 %v730
  %v890 = vpop.f32.mrb[0].mxu0
  %v891 = vadd.f32 %v698, %v890
  %v892 = vpop.f32.mrb[0].mxu0
  %893 = vmatprep.mubr.f32.mxu0 0.0
  %894 = vmatmul.mubr.f32.gmra.mrb[0].mxu0 %v733
  %v895 = vpop.f32.mrb[0].mxu0
  %v896 = vadd.f32 %v698, %v895
  %v897 = vpop.f32.mrb[0].mxu0
  %898 = vmatprep.mubr.f32.mxu0 0.0
  %899 = vmatmul.mubr.f32.gmra.mrb[0].mxu0 %v736
  %v900 = vpop.f32.mrb[0].mxu0
  %v901 = vadd.f32 %v698, %v900
  %v902 = vpop.f32.mrb[0].mxu0
  %903 = vmatprep.mubr.f32.mxu0 0.0
  %904 = vmatmul.mubr.f32.gmra.mrb[0].mxu0 %v739
  %v905 = vpop.f32.mrb[0].mxu0
  %v906 = vadd.f32 %v698, %v905
  %v907 = vpop.f32.mrb[0].mxu0
  %908 = vmatprep.mubr.f32.mxu0 0.0
  %909 = vmatmul.mubr.f32.gmra.mrb[0].mxu0 %v742
  %v910 = vpop.f32.mrb[0].mxu0
  %v911 = vadd.f32 %v698, %v910
  %v912 = vpop.f32.mrb[0].mxu0
  %913 = vmatprep.mubr.f32.mxu0 0.0
  %914 = vmatmul.mubr.f32.gmra.mrb[0].mxu0 %v745
  %v915 = vpop.f32.mrb[0].mxu0
  %v916 = vadd.f32 %v698, %v915
  %v917 = vpop.f32.mrb[0].mxu0
  %918 = vmatprep.mubr.f32.mxu0 0.0
  %919 = vmatmul.mubr.f32.gmra.mrb[0].mxu0 %v748
  %v920 = vpop.f32.mrb[0].mxu0
  %v921 = vadd.f32 %v698, %v920
  %v922 = vpop.f32.mrb[0].mxu0
  %923 = vmatprep.mubr.f32.mxu0 0.0
  %924 = vmatmul.mubr.f32.gmra.mrb[0].mxu0 %v751
  %v925 = vpop.f32.mrb[0].mxu0
  %v926 = vadd.f32 %v698, %v925
  %v927 = vpop.f32.mrb[0].mxu0
  %928 = vmatprep.mubr.f32.mxu0 0.0
  %929 = vmatmul.mubr.f32.gmra.mrb[0].mxu0 %v754
  %v930 = vpop.f32.mrb[0].mxu0
  %v931 = vadd.f32 %v698, %v930
  %v932 = vpop.f32.mrb[0].mxu0
  %933 = vmatprep.mubr.f32.mxu0 0.0
  %934 = vmatmul.mubr.f32.gmra.mrb[0].mxu0 %v757
  %v935 = vpop.f32.mrb[0].mxu0
  %v936 = vadd.f32 %v698, %v935
  %v937 = vpop.f32.mrb[0].mxu0
  %938 = vmatprep.mubr.f32.mxu0 0.0
  %939 = vmatmul.mubr.f32.gmra.mrb[0].mxu0 %v760
  %v940 = vpop.f32.mrb[0].mxu0
  %v941 = vadd.f32 %v698, %v940
  %v942 = vpop.f32.mrb[0].mxu0
  %943 = vmatprep.mubr.f32.mxu0 0.0
  %944 = vmatmul.mubr.f32.gmra.mrb[0].mxu0 %v763
  %v945 = vpop.f32.mrb[0].mxu0
  %v946 = vadd.f32 %v698, %v945
  %v947 = vpop.f32.mrb[0].mxu0
  %948 = vmatprep.mubr.f32.mxu0 0.0
  %949 = vmatmul.mubr.f32.gmra.mrb[0].mxu0 %v766
  %v950 = vpop.f32.mrb[0].mxu0
  %v951 = vadd.f32 %v698, %v950
  %v952 = vpop.f32.mrb[0].mxu0
  %953 = vmatprep.mubr.f32.mxu0 0.0
  %954 = vmatmul.mubr.f32.gmra.mrb[0].mxu0 %v769
  %v955 = vpop.f32.mrb[0].mxu0
  %v956 = vadd.f32 %v698, %v955
  %v957 = vpop.f32.mrb[0].mxu0
  %958 = vmatprep.mubr.f32.mxu0 0.0
  %959 = vmatmul.mubr.f32.gmra.mrb[0].mxu0 %v772
  %v960 = vpop.f32.mrb[0].mxu0
  %v961 = vadd.f32 %v698, %v960
  %v962 = vpop.f32.mrb[0].mxu0
  %963 = vdwg.mxu0
  %vm964 = vcmask 64512
  %965 = vst.msk [vmem:[%s7] sm:$0xff] %vm964, %v841
  %966 = vst.msk [vmem:[%s7 + $0x8] sm:$0xff] %vm964, %v846
  %967 = vst.msk [vmem:[%s7 + $0x10] sm:$0xff] %vm964, %v851
  %968 = vst.msk [vmem:[%s7 + $0x18] sm:$0xff] %vm964, %v856
  %969 = vst.msk [vmem:[%s7 + $0x20] sm:$0xff] %vm964, %v861
  %970 = vst.msk [vmem:[%s7 + $0x28] sm:$0xff] %vm964, %v866
  %971 = vst.msk [vmem:[%s7 + $0x30] sm:$0xff] %vm964, %v871
  %972 = vst.msk [vmem:[%s7 + $0x38] sm:$0xff] %vm964, %v876
  %973 = vst.msk [vmem:[%s7 + $0x40] sm:$0xff] %vm964, %v881
  %974 = vst.msk [vmem:[%s7 + $0x48] sm:$0xff] %vm964, %v886
  %975 = vst.msk [vmem:[%s7 + $0x50] sm:$0xff] %vm964, %v891
  %976 = vst.msk [vmem:[%s7 + $0x58] sm:$0xff] %vm964, %v896
  %977 = vst.msk [vmem:[%s7 + $0x60] sm:$0xff] %vm964, %v901
  %978 = vst.msk [vmem:[%s7 + $0x68] sm:$0xff] %vm964, %v906
  %979 = vst.msk [vmem:[%s7 + $0x70] sm:$0xff] %vm964, %v911
  %980 = vst.msk [vmem:[%s7 + $0x78] sm:$0xff] %vm964, %v916
  %981 = vst.msk [vmem:[%s7 + $0x80] sm:$0xff] %vm964, %v921
  %982 = vst.msk [vmem:[%s7 + $0x88] sm:$0xff] %vm964, %v926
  %983 = vst.msk [vmem:[%s7 + $0x90] sm:$0xff] %vm964, %v931
  %984 = vst.msk [vmem:[%s7 + $0x98] sm:$0xff] %vm964, %v936
  %985 = vst.msk [vmem:[%s7 + $0xa0] sm:$0xff] %vm964, %v941
  %986 = vst.msk [vmem:[%s7 + $0xa8] sm:$0xff] %vm964, %v946
  %987 = vst.msk [vmem:[%s7 + $0xb0] sm:$0xff] %vm964, %v951
  %988 = vst.msk [vmem:[%s7 + $0xb8] sm:$0xff] %vm964, %v956
  %989 = vst.msk [vmem:[%s7 + $0xc0] sm:$0xff] %vm964, %v961
  // Predicated region
  $region30: #{tpu_custom_call.1} parent=0 // pred_check
    _
  $region31: #{tpu_custom_call.1} parent=0 // pred_check_branch
    %991 = sbr.rel (0) target = $region33
  $region32: #{tpu_custom_call.1} parent=0 // pred_region
    _
  $region33: #{tpu_custom_call.1} parent=0 // pred_fallthru
    _
  // Predicated region
  $region34: #{tpu_custom_call.1} parent=0 // pred_check
    _
  $region35: #{tpu_custom_call.1} parent=0 // pred_check_branch
    %993 = sbr.rel (0) target = $region37
  $region36: #{tpu_custom_call.1} parent=0 // pred_region
    _
  $region37: #{tpu_custom_call.1} parent=0 // pred_fallthru
    _

</llo_original>
